<compile_context>
chip_gen: v7x
topology: tpu7x:2x2x1
jax: 0.10.0
libtpu: 0.0.40
codegen_flags: <defaults>
</compile_context>

<pallas_src>
import math

import jax
import jax.numpy as jnp
from jax.experimental import pallas as pl
from jax.experimental.pallas import tpu as pltpu


_MIB = 1024 * 1024
# Per-TensorCore VMEM floor across generations (v7x = 64 MiB).  get_tpu_info
# may report a per-chip number on multi-TensorCore parts, so clamp to the
# floor instead of sizing against 128 MiB.
_VMEM_FLOOR = 64 * _MIB
_VMEM_LIMIT_CAP = 48 * _MIB      # <= 75% of the per-TC floor
_WORK_BUDGET = 28 * _MIB         # resident bytes target (dbl-buffered input + temps)
_TARGET_BLOCK_BYTES = 8 * _MIB   # per-step input DMA target (amortizes ~0.35us/step)
_MIN_PARALLEL_BLOCKS = 8         # >= 4 grid steps per TensorCore on v7x


def _round_down(a, b):
    return (a // b) * b


def _sublane(itemsize):
    # f32 -> 8, bf16 -> 16, int8/fp8 -> 32 (packed sublane tiles)
    return 8 * max(1, 4 // max(1, itemsize))


def _vmem_budget_bytes():
    cap = _VMEM_FLOOR
    try:
        info = pltpu.get_tpu_info()
        reported = int(getattr(info, "vmem_capacity_bytes", 0) or 0)
        if reported:
            cap = min(reported, _VMEM_FLOOR)
    except Exception:
        pass
    return cap


def fast_adaptive_cat_avg_max_pool(x, flatten: bool = False):
    """Channels-first input (N, C, *spatial).  Returns cat([mean, amax]) over
    the spatial dims along the channel axis (keepdim unless flatten)."""
    N, C = x.shape[0], x.shape[1]
    spatial = x.shape[2:]
    HW = int(math.prod(spatial)) if spatial else 1
    NC = N * C
    dtype = x.dtype
    itemsize = jnp.dtype(dtype).itemsize
    sub = _sublane(itemsize)
    is_float = jnp.issubdtype(dtype, jnp.floating)

    x2d = x.reshape(NC, HW)
    inv_hw = 1.0 / float(HW)

    vmem_cap = _vmem_budget_bytes()
    work_budget = min(_WORK_BUDGET, vmem_cap * 7 // 16)

    # f32 upcast temporary for the mean only exists for sub-32-bit dtypes.
    f32_temp_per_elem = 4 if itemsize < 4 else 0

    # ---- simple path (full spatial extent per block) vs split-HW path ------
    min_rows = min(NC, sub)
    per_row_simple = 2 * HW * itemsize + HW * f32_temp_per_elem + 2 * 2 * itemsize
    split_hw = min_rows * per_row_simple > work_budget

    if not split_hw:
        # One block covers the whole spatial extent of each row.
        hw_tile = HW
        if NC <= sub:
            row_tile = NC
        else:
            rows_cap_bytes = _TARGET_BLOCK_BYTES // max(1, HW * itemsize)
            rows_cap_budget = work_budget // per_row_simple
            rows_for_grid = NC // _MIN_PARALLEL_BLOCKS   # keep >= ~8 parallel blocks
            row_tile = min(rows_cap_bytes, rows_cap_budget, rows_for_grid)
            row_tile = max(sub, _round_down(row_tile, sub))
            if row_tile >= NC:
                row_tile = NC

        grid = (pl.cdiv(NC, row_tile),)
        dim_sem = ("parallel",)
        in_specs = [pl.BlockSpec((row_tile, HW), lambda i: (i, 0))]
        out_spec = pl.BlockSpec((row_tile, 2), lambda i: (i, 0))
        scratch_shapes = []

        def kernel(x_ref, out_ref):
            xv = x_ref[...]
            # Mean accumulates in f32; max runs directly on the native dtype.
            avg = jnp.sum(xv, axis=-1, keepdims=True, dtype=jnp.float32) * inv_hw
            mx = jnp.max(xv, axis=-1, keepdims=True)
            out_ref[...] = jnp.concatenate(
                (avg.astype(out_ref.dtype), mx.astype(out_ref.dtype)), axis=-1)

        need = (row_tile * (2 * HW * itemsize + HW * f32_temp_per_elem)
                + 2 * row_tile * 2 * itemsize)

    else:
        # Huge spatial extent: tile HW too (reduction axis last) and keep
        # f32 running sum/max accumulators in VMEM scratch.
        if NC <= sub:
            row_tile = NC
        else:
            row_tile = min(256, max(sub, _round_down(NC // 2, sub)))
        # Per-element resident bytes: dbl-buffered input + f32 upcast (sum)
        # + i32 iota + two where temporaries (edge block only, but budgeted).
        per_elem = 2 * itemsize + f32_temp_per_elem + 4 + 2 * itemsize
        hw_tile = _round_down(work_budget // (row_tile * per_elem), 128)
        hw_tile = min(hw_tile,
                      _round_down(_TARGET_BLOCK_BYTES // (row_tile * itemsize), 128))
        hw_tile = max(128, hw_tile)
        hw_rem = (HW % hw_tile) != 0
        neg_fill = jnp.asarray(-jnp.inf if is_float else jnp.iinfo(dtype).min, dtype)
        zero_fill = jnp.asarray(0, dtype)

        grid = (pl.cdiv(NC, row_tile), pl.cdiv(HW, hw_tile))
        dim_sem = ("parallel", "arbitrary")
        in_specs = [pl.BlockSpec((row_tile, hw_tile), lambda i, k: (i, k))]
        out_spec = pl.BlockSpec((row_tile, 2), lambda i, k: (i, 0))
        scratch_shapes = [
            pltpu.VMEM((row_tile, 1), jnp.float32),  # running sum
            pltpu.VMEM((row_tile, 1), jnp.float32),  # running max
        ]

        def kernel(x_ref, out_ref, sum_acc, max_acc):
            k = pl.program_id(1)
            nk = pl.num_programs(1)

            @pl.when(k == 0)
            def _():
                sum_acc[...] = jnp.zeros_like(sum_acc)
                max_acc[...] = jnp.full_like(max_acc, -jnp.inf)

            def accumulate(xs, xm):
                sum_acc[...] += jnp.sum(xs, axis=-1, keepdims=True,
                                        dtype=jnp.float32)
                max_acc[...] = jnp.maximum(
                    max_acc[...],
                    jnp.max(xm, axis=-1, keepdims=True).astype(jnp.float32))

            if hw_rem:
                # Only the final hw block can straddle HW: pay iota/where
                # masking there only.  Both sum and max are masked because
                # out-of-bounds block contents are undefined.
                @pl.when(k != nk - 1)
                def _():
                    xv = x_ref[...]
                    accumulate(xv, xv)

                @pl.when(k == nk - 1)
                def _():
                    xv = x_ref[...]
                    col = (jax.lax.broadcasted_iota(jnp.int32, xv.shape, 1)
                           + k * hw_tile)
                    valid = col < HW
                    accumulate(jnp.where(valid, xv, zero_fill),
                               jnp.where(valid, xv, neg_fill))
            else:
                xv = x_ref[...]
                accumulate(xv, xv)

            @pl.when(k == nk - 1)
            def _():
                avg = sum_acc[...] * inv_hw
                out_ref[...] = jnp.concatenate(
                    (avg.astype(out_ref.dtype), max_acc[...].astype(out_ref.dtype)),
                    axis=-1)

        need = (row_tile * hw_tile * per_elem
                + 2 * row_tile * 128 * 4
                + 2 * row_tile * 2 * itemsize)

    vmem_limit = int(min(_VMEM_LIMIT_CAP, max(16 * _MIB, need + 4 * _MIB)))

    out = pl.pallas_call(
        kernel,
        out_shape=jax.ShapeDtypeStruct((NC, 2), dtype),
        grid_spec=pltpu.PrefetchScalarGridSpec(
            num_scalar_prefetch=0,
            grid=grid,
            in_specs=in_specs,
            out_specs=out_spec,
            scratch_shapes=scratch_shapes,
        ),
        compiler_params=pltpu.CompilerParams(
            dimension_semantics=dim_sem,
            vmem_limit_bytes=vmem_limit,
        ),
        cost_estimate=pl.CostEstimate(
            flops=2 * NC * HW,
            transcendentals=0,
            bytes_accessed=NC * HW * itemsize + 2 * NC * itemsize,
        ),
    )(x2d)

    x_avg = out[:, 0].reshape(N, C)
    x_max = out[:, 1].reshape(N, C)
    if flatten:
        return jnp.concatenate((x_avg, x_max), axis=1)  # (N, 2C)
    ones = (1,) * len(spatial)
    return jnp.concatenate(
        (x_avg.reshape((N, C) + ones), x_max.reshape((N, C) + ones)), axis=1
    )  # (N, 2C, 1, 1, ...)


if __name__ == "__main__":
    key = jax.random.PRNGKey(0)

    # Main demo shape (NCHW).
    N, C, H, W = 2, 4, 16, 16
    x = jax.random.normal(key, (N, C, H, W), dtype=jnp.float32)

    out = fast_adaptive_cat_avg_max_pool(x, flatten=False)
    out = jax.block_until_ready(out)

    ref = jnp.concatenate(
        (jnp.mean(x, axis=(2, 3), keepdims=True),
         jnp.max(x, axis=(2, 3), keepdims=True)),
        axis=1,
    )
    assert out.shape == (N, 2 * C, 1, 1), out.shape
    assert jnp.allclose(out, ref, atol=1e-5, rtol=1e-5)

    # Secondary check: NC not a multiple of 8, HW not a multiple of 128,
    # ragged edge row block (no wrapper-side padding), flatten=True.
    x2 = jax.random.normal(jax.random.PRNGKey(1), (1, 12, 7, 9), dtype=jnp.float32)
    out2 = jax.block_until_ready(fast_adaptive_cat_avg_max_pool(x2, flatten=True))
    ref2 = jnp.concatenate(
        (jnp.mean(x2, axis=(2, 3)), jnp.max(x2, axis=(2, 3))), axis=1
    )
    assert out2.shape == (1, 24), out2.shape
    assert jnp.allclose(out2, ref2, atol=1e-5, rtol=1e-5)

    print("KERNEL_OK")
</pallas_src>

<mosaic_0001>
module attributes {stable_mosaic.version = 11 : i64} {
  func.func @kernel(%arg0: i32, %arg1: memref<8x256xf32, #tpu.memory_space<vmem>>, %arg2: memref<8x2xf32, #tpu.memory_space<vmem>>) attributes {dimension_semantics = [#tpu.dimension_semantics<parallel>], iteration_bounds = array<i64: 1>, scalar_prefetch = 0 : i64, scratch_operands = 0 : i64, tpu.core_type = #tpu.core_type<tc>, window_params = [{transform_indices = @transform_0, window_bounds = array<i64: 8, 256>}, {transform_indices = @transform_1, window_bounds = array<i64: 8, 2>}]} {
    %c0 = arith.constant 0 : index
    %c0_0 = arith.constant 0 : index
    %0 = vector.load %arg1[%c0, %c0_0] : memref<8x256xf32, #tpu.memory_space<vmem>>, vector<8x256xf32>
    %cst = arith.constant dense<0.000000e+00> : vector<8xf32>
    %1 = vector.multi_reduction <add>, %0, %cst [1] : vector<8x256xf32> to vector<8xf32>
    %2 = vector.shape_cast %1 : vector<8xf32> to vector<8x1xf32>
    %cst_1 = arith.constant 3.906250e-03 : f32
    %3 = vector.broadcast %cst_1 : f32 to vector<8x1xf32>
    %4 = arith.mulf %2, %3 : vector<8x1xf32>
    %cst_2 = arith.constant dense<0xFF800000> : vector<8xf32>
    %5 = vector.multi_reduction <maximumf>, %0, %cst_2 [1] : vector<8x256xf32> to vector<8xf32>
    %6 = vector.shape_cast %5 : vector<8xf32> to vector<8x1xf32>
    %7 = tpu.concatenate %4, %6 in 1 : vector<8x1xf32>, vector<8x1xf32> -> vector<8x2xf32>
    %c0_3 = arith.constant 0 : index
    %c0_4 = arith.constant 0 : index
    %8 = vector.load %arg2[%c0_3, %c0_4] : memref<8x2xf32, #tpu.memory_space<vmem>>, vector<8x2xf32>
    tpu.vector_store %arg2[%c0_3, %c0_4], %7 {strides = array<i32>} : memref<8x2xf32, #tpu.memory_space<vmem>>, vector<8x2xf32>,
    return
  }
  func.func @transform_0(%arg0: i32) -> (i32, i32) {
    %c0_i32 = arith.constant 0 : i32
    %c0_i32_0 = arith.constant 0 : i32
    return %arg0, %c0_i32 : i32, i32
  }
  func.func @transform_1(%arg0: i32) -> (i32, i32) {
    %c0_i32 = arith.constant 0 : i32
    %c0_i32_0 = arith.constant 0 : i32
    return %arg0, %c0_i32 : i32, i32
  }
}

</mosaic_0001>

<llo_original>
// kernel: tpu_custom_call.1
$region0: #{tpu_custom_call.1}
  #allocation0 [shape = 'u32[]', space=smem, size = 0x4, offset = 0x4, fixed_abs, tag = 'smem constant byte address 0x4 - core index']
  #allocation1 [shape = 'u32[144,128]{1,0:T(1,128)}', space=vmem, size = 0x12000, scoped, tag = 'internal scratch']
  %s0 = inlined_call_operand.hbm [shape: f32[8,256], index: 0, kind: input, shape index: {}]
  %s1 = inlined_call_operand.vmem [shape: f32[8,2], index: 1, kind: output, shape index: {}]
  %s2 = sld [smem:[#allocation0]]
  $region18: #{tpu_custom_call.1} parent=0
    _
  %s4 = ssub.s32 1, %s2
  %s5 = scalar_select 0, %s4, %s2
  $region1: #{tpu_custom_call.1} parent=0
    #allocation2 [shape = 'u8[8192]{0}', space=vmem, size = 0x2000, scoped, tag = 'input window, operand 0, single buffered']
    #allocation3 [shape = 's32[1]{0}', space=sflag, size = 0x4, scoped, tag = 'scoped memory for tpu_custom_call.1']
    %6 = vsyncpa [#allocation3], 0
    // Predicated region
    $region2: #{tpu_custom_call.1} parent=1 // pred_check
      _
    $region3: #{tpu_custom_call.1} parent=1 // pred_check_branch
      %8 = sbr.rel (0) target = $region5
    $region4: #{tpu_custom_call.1} parent=1 // pred_region
      %s10 = ssub.s32 256, 256
      %11 = vsyncadd [#allocation3], %s10
      %s13 = sshll.u32 [#allocation2], 4
      %s14 = int_to_ptr.vmem [resolvable:$true] %s13
      %16 = dma.hbm_to_vmem [thread:$0]  %s0, 256, %s14, [#allocation3]
    $region5: #{tpu_custom_call.1} parent=1 // pred_fallthru
      _
    // Predicated region
    $region6: #{tpu_custom_call.1} parent=1 // pred_check
      _
    $region7: #{tpu_custom_call.1} parent=1 // pred_check_branch
      %18 = sbr.rel (0) target = $region9
    $region8: #{tpu_custom_call.1} parent=1 // pred_region
      %19 = dma.done [#allocation3], 256
    $region9: #{tpu_custom_call.1} parent=1 // pred_fallthru
      _
    %v20 = vld [vmem:[#allocation2] sm:$0xff]
    %v21 = vld [vmem:[#allocation2 + $0x8] sm:$0xff]
    %v22 = vadd.f32 %v20, %v21
    %23 = vadd.xlane.f32.xlu0 %v22
    %v24 = vpop.xlane.xlu0 %23
    %v25 = vmul.f32 %v24, 0.00390625
    %v26 = vmax.f32 %v20, %v21
    %27 = vmax.xlane.f32.xlu0 %v26
    %v28 = vpop.xlane.xlu0 %27
    %vm29 = vcmask 7168
    %v30 = vsel %vm29, %v25, %v28
    %vm31 = vcmask 15360
    %32 = vst.msk [vmem:[%s1] sm:$0xff] %vm31, %v30
    // Predicated region
    $region10: #{tpu_custom_call.1} parent=1 // pred_check
      _
    $region11: #{tpu_custom_call.1} parent=1 // pred_check_branch
      %34 = sbr.rel (0) target = $region13
    $region12: #{tpu_custom_call.1} parent=1 // pred_region
      _
    $region13: #{tpu_custom_call.1} parent=1 // pred_fallthru
      _
    // Predicated region
    $region14: #{tpu_custom_call.1} parent=1 // pred_check
      _
    $region15: #{tpu_custom_call.1} parent=1 // pred_check_branch
      %36 = sbr.rel (0) target = $region17
    $region16: #{tpu_custom_call.1} parent=1 // pred_region
      _
    $region17: #{tpu_custom_call.1} parent=1 // pred_fallthru
      _
    %37 = vsyncpa [#allocation3], 1

</llo_original>
